<compile_context>
chip_gen: v6e
topology: v6e:2x2x1
jax: 0.10.0
libtpu: 0.0.40
codegen_flags: <defaults>
</compile_context>

<pallas_src>
import jax
import jax.numpy as jnp
from jax import lax
from jax.experimental import pallas as pl
from jax.experimental.pallas import tpu as pltpu

_EPS = 1e-8                 # torch cosine_similarity eps (clamps each norm)
_EPS_SQ = _EPS * _EPS       # equivalent clamp on squared norms
_NUM_CORE_SPLITS = 2        # leading "parallel" grid axis; uses both TCs on v7x
_TILE_BYTES_BUDGET = (3 * 1024 * 1024) // 2   # ~1.5 MiB per-input tile


def _hybrid_manifold_partial_kernel(pe_ref, te_ref, ph_ref, th_ref,
                                    cos_acc_ref, sq_acc_ref):
    """Accumulate per-core partial sums.

    cos_acc: sum_i cos_sim(pe_i, te_i)   (zero-padded rows contribute exactly 0)
    sq_acc : sum over all elements of (ph - th)^2
    Each (8, 128) accumulator block holds its core's partial sum broadcast to every slot.
    """
    step = pl.program_id(1)

    @pl.when(step == 0)
    def _():
        cos_acc_ref[...] = jnp.zeros_like(cos_acc_ref)
        sq_acc_ref[...] = jnp.zeros_like(sq_acc_ref)

    # Cast the narrow native dtype to f32 per tile (keeps HBM traffic at native width).
    pe = pe_ref[...].astype(jnp.float32)   # (TB, De)
    te = te_ref[...].astype(jnp.float32)   # (TB, De)
    ph = ph_ref[...].astype(jnp.float32)   # (TB, Dh)
    th = th_ref[...].astype(jnp.float32)   # (TB, Dh)

    # Row-wise cosine similarity on the VPU; rsqrt runs on the EUP (own VLIW slot).
    dot = jnp.sum(pe * te, axis=-1, keepdims=True)          # (TB, 1)
    n_pe_sq = jnp.sum(pe * pe, axis=-1, keepdims=True)      # (TB, 1)
    n_te_sq = jnp.sum(te * te, axis=-1, keepdims=True)      # (TB, 1)
    denom_sq = jnp.maximum(n_pe_sq, _EPS_SQ) * jnp.maximum(n_te_sq, _EPS_SQ)
    cos = dot * lax.rsqrt(denom_sq)                          # zero rows -> cos == 0

    diff = ph - th

    cos_acc_ref[...] += jnp.sum(cos)
    sq_acc_ref[...] += jnp.sum(diff * diff)


def _round_up(x, m):
    return ((x + m - 1) // m) * m


def _choose_batch_tile(batch, d_max, itemsize):
    # Keep each per-input tile <= ~1.5 MiB so that 4 inputs x 2 pipeline buffers stay
    # far below v7x's (smaller) scoped VMEM, while tiles stay large enough to amortize
    # per-grid-step overhead. Sub-32-bit dtypes pack 16 sublanes/vreg -> align to 16.
    align = 8 if itemsize >= 4 else 16
    tb = _TILE_BYTES_BUDGET // max(1, d_max * itemsize)
    tb = max(align, (tb // align) * align)
    per_core = _round_up(pl.cdiv(batch, _NUM_CORE_SPLITS), align)
    return min(tb, per_core)


def hybrid_manifold_loss(pred, target, *, batch_tile=None):
    """pred / target: dicts with 'euclidean' (B, De) and 'hyperbolic' (B, Dh)."""
    pe, te = pred["euclidean"], target["euclidean"]
    ph, th = pred["hyperbolic"], target["hyperbolic"]

    # Early exit mirroring the PyTorch numel() == 0 check (static shape check).
    if te.size == 0 or th.size == 0:
        return jnp.array(0.0, dtype=jnp.float32)

    batch, d_euc = pe.shape
    _, d_hyp = ph.shape

    itemsize = max(a.dtype.itemsize for a in (pe, te, ph, th))
    tb = batch_tile if batch_tile is not None else _choose_batch_tile(
        batch, max(d_euc, d_hyp), itemsize)
    nt = pl.cdiv(batch, _NUM_CORE_SPLITS * tb)       # batch tiles per core split
    b_pad = _NUM_CORE_SPLITS * nt * tb

    if b_pad != batch:
        # Zero rows contribute exactly 0 to both partial sums (cos of a zero row is 0
        # after the eps clamp, diff of zero rows is 0); true counts are used below.
        pad = ((0, b_pad - batch), (0, 0))
        pe = jnp.pad(pe, pad)
        te = jnp.pad(te, pad)
        ph = jnp.pad(ph, pad)
        th = jnp.pad(th, pad)

    def in_map(c, i):
        return (c * nt + i, 0)

    def out_map(c, i):        # same block for all i -> resident per-core accumulator
        return (c, 0)

    acc_shape = jax.ShapeDtypeStruct((_NUM_CORE_SPLITS * 8, 128), jnp.float32)

    cos_part, sq_part = pl.pallas_call(
        _hybrid_manifold_partial_kernel,
        grid=(_NUM_CORE_SPLITS, nt),
        in_specs=[
            pl.BlockSpec((tb, d_euc), in_map),
            pl.BlockSpec((tb, d_euc), in_map),
            pl.BlockSpec((tb, d_hyp), in_map),
            pl.BlockSpec((tb, d_hyp), in_map),
        ],
        out_specs=[
            pl.BlockSpec((8, 128), out_map),
            pl.BlockSpec((8, 128), out_map),
        ],
        out_shape=(acc_shape, acc_shape),
        compiler_params=pltpu.CompilerParams(
            dimension_semantics=("parallel", "arbitrary")),
    )(pe, te, ph, th)

    # Each core's (8, 128) block holds its partial sum broadcast everywhere; pick one
    # slot per core block and finish the (tiny, scalar) reduction in the wrapper.
    sum_cos = jnp.sum(cos_part[::8, 0])
    sum_sq = jnp.sum(sq_part[::8, 0])

    euclidean_loss = 1.0 - sum_cos / batch
    hyperbolic_loss = sum_sq / (batch * d_hyp)
    return 0.7 * euclidean_loss + 0.3 * hyperbolic_loss


def _reference_loss(pred, target):
    pe = pred["euclidean"].astype(jnp.float32)
    te = target["euclidean"].astype(jnp.float32)
    ph = pred["hyperbolic"].astype(jnp.float32)
    th = target["hyperbolic"].astype(jnp.float32)
    dot = jnp.sum(pe * te, axis=-1)
    n1 = jnp.maximum(jnp.linalg.norm(pe, axis=-1), _EPS)
    n2 = jnp.maximum(jnp.linalg.norm(te, axis=-1), _EPS)
    euc = jnp.mean(1.0 - dot / (n1 * n2))
    mse = jnp.mean((ph - th) ** 2)
    return 0.7 * euc + 0.3 * mse


if __name__ == "__main__":
    keys = jax.random.split(jax.random.PRNGKey(0), 8)

    # Test 1: f32 inputs, batch not a multiple of the tile (exercises zero-padding).
    B1, DE1, DH1 = 24, 32, 16
    pred1 = {
        "euclidean": jax.random.normal(keys[0], (B1, DE1), dtype=jnp.float32),
        "hyperbolic": jax.random.normal(keys[1], (B1, DH1), dtype=jnp.float32),
    }
    target1 = {
        "euclidean": jax.random.normal(keys[2], (B1, DE1), dtype=jnp.float32),
        "hyperbolic": jax.random.normal(keys[3], (B1, DH1), dtype=jnp.float32),
    }
    loss1 = jax.block_until_ready(hybrid_manifold_loss(pred1, target1))
    ref1 = _reference_loss(pred1, target1)
    assert jnp.allclose(loss1, ref1, atol=1e-5, rtol=1e-5), (loss1, ref1)

    # Test 2: bf16 inputs passed natively + multiple "arbitrary" grid steps per core.
    B2, DE2, DH2 = 40, 32, 32
    pred2 = {
        "euclidean": jax.random.normal(keys[4], (B2, DE2), dtype=jnp.bfloat16),
        "hyperbolic": jax.random.normal(keys[5], (B2, DH2), dtype=jnp.bfloat16),
    }
    target2 = {
        "euclidean": jax.random.normal(keys[6], (B2, DE2), dtype=jnp.bfloat16),
        "hyperbolic": jax.random.normal(keys[7], (B2, DH2), dtype=jnp.bfloat16),
    }
    loss2 = jax.block_until_ready(
        hybrid_manifold_loss(pred2, target2, batch_tile=16))
    ref2 = _reference_loss(pred2, target2)
    assert jnp.allclose(loss2, ref2, atol=1e-5, rtol=1e-5), (loss2, ref2)

    print("KERNEL_OK")
</pallas_src>

<mosaic_0001>
module attributes {stable_mosaic.version = 11 : i64} {
  func.func @_hybrid_manifold_partial_kernel(%arg0: i32, %arg1: i32, %arg2: memref<16x32xf32, #tpu.memory_space<vmem>>, %arg3: memref<16x32xf32, #tpu.memory_space<vmem>>, %arg4: memref<16x16xf32, #tpu.memory_space<vmem>>, %arg5: memref<16x16xf32, #tpu.memory_space<vmem>>, %arg6: memref<8x128xf32, #tpu.memory_space<vmem>>, %arg7: memref<8x128xf32, #tpu.memory_space<vmem>>) attributes {dimension_semantics = [#tpu.dimension_semantics<parallel>, #tpu.dimension_semantics<arbitrary>], iteration_bounds = array<i64: 2, 1>, scalar_prefetch = 0 : i64, scratch_operands = 0 : i64, tpu.core_type = #tpu.core_type<tc>, window_params = [{transform_indices = @transform_0, window_bounds = array<i64: 16, 32>}, {transform_indices = @transform_1, window_bounds = array<i64: 16, 32>}, {transform_indices = @transform_2, window_bounds = array<i64: 16, 16>}, {transform_indices = @transform_3, window_bounds = array<i64: 16, 16>}, {transform_indices = @transform_4, window_bounds = array<i64: 8, 128>}, {transform_indices = @transform_5, window_bounds = array<i64: 8, 128>}]} {
    %c0_i32 = arith.constant 0 : i32
    %0 = arith.cmpi eq, %arg1, %c0_i32 : i32
    %1 = arith.extui %0 : i1 to i32
    %c0_i32_0 = arith.constant 0 : i32
    %2 = arith.cmpi ne, %1, %c0_i32_0 : i32
    scf.if %2 {
      %cst_22 = arith.constant 0.000000e+00 : f32
      %41 = vector.broadcast %cst_22 : f32 to vector<8x128xf32>
      %c0_23 = arith.constant 0 : index
      %c0_24 = arith.constant 0 : index
      %42 = vector.load %arg6[%c0_23, %c0_24] : memref<8x128xf32, #tpu.memory_space<vmem>>, vector<8x128xf32>
      tpu.vector_store %arg6[%c0_23, %c0_24], %41 {strides = array<i32>} : memref<8x128xf32, #tpu.memory_space<vmem>>, vector<8x128xf32>,
      %cst_25 = arith.constant 0.000000e+00 : f32
      %43 = vector.broadcast %cst_25 : f32 to vector<8x128xf32>
      %c0_26 = arith.constant 0 : index
      %c0_27 = arith.constant 0 : index
      %44 = vector.load %arg7[%c0_26, %c0_27] : memref<8x128xf32, #tpu.memory_space<vmem>>, vector<8x128xf32>
      tpu.vector_store %arg7[%c0_26, %c0_27], %43 {strides = array<i32>} : memref<8x128xf32, #tpu.memory_space<vmem>>, vector<8x128xf32>,
    } else {
    }
    %c0 = arith.constant 0 : index
    %c0_1 = arith.constant 0 : index
    %3 = vector.load %arg2[%c0, %c0_1] : memref<16x32xf32, #tpu.memory_space<vmem>>, vector<16x32xf32>
    %c0_2 = arith.constant 0 : index
    %c0_3 = arith.constant 0 : index
    %4 = vector.load %arg3[%c0_2, %c0_3] : memref<16x32xf32, #tpu.memory_space<vmem>>, vector<16x32xf32>
    %c0_4 = arith.constant 0 : index
    %c0_5 = arith.constant 0 : index
    %5 = vector.load %arg4[%c0_4, %c0_5] : memref<16x16xf32, #tpu.memory_space<vmem>>, vector<16x16xf32>
    %c0_6 = arith.constant 0 : index
    %c0_7 = arith.constant 0 : index
    %6 = vector.load %arg5[%c0_6, %c0_7] : memref<16x16xf32, #tpu.memory_space<vmem>>, vector<16x16xf32>
    %7 = arith.mulf %3, %4 : vector<16x32xf32>
    %cst = arith.constant dense<0.000000e+00> : vector<16xf32>
    %8 = vector.multi_reduction <add>, %7, %cst [1] : vector<16x32xf32> to vector<16xf32>
    %9 = vector.shape_cast %8 : vector<16xf32> to vector<16x1xf32>
    %10 = arith.mulf %3, %3 : vector<16x32xf32>
    %cst_8 = arith.constant dense<0.000000e+00> : vector<16xf32>
    %11 = vector.multi_reduction <add>, %10, %cst_8 [1] : vector<16x32xf32> to vector<16xf32>
    %12 = vector.shape_cast %11 : vector<16xf32> to vector<16x1xf32>
    %13 = arith.mulf %4, %4 : vector<16x32xf32>
    %cst_9 = arith.constant dense<0.000000e+00> : vector<16xf32>
    %14 = vector.multi_reduction <add>, %13, %cst_9 [1] : vector<16x32xf32> to vector<16xf32>
    %15 = vector.shape_cast %14 : vector<16xf32> to vector<16x1xf32>
    %cst_10 = arith.constant 1.000000e-16 : f32
    %16 = vector.broadcast %cst_10 : f32 to vector<16x1xf32>
    %17 = arith.maximumf %12, %16 : vector<16x1xf32>
    %cst_11 = arith.constant 1.000000e-16 : f32
    %18 = vector.broadcast %cst_11 : f32 to vector<16x1xf32>
    %19 = arith.maximumf %15, %18 : vector<16x1xf32>
    %20 = arith.mulf %17, %19 : vector<16x1xf32>
    %21 = math.rsqrt %20 : vector<16x1xf32>
    %22 = arith.mulf %9, %21 : vector<16x1xf32>
    %23 = arith.subf %5, %6 : vector<16x16xf32>
    %c0_12 = arith.constant 0 : index
    %c0_13 = arith.constant 0 : index
    %24 = vector.load %arg6[%c0_12, %c0_13] : memref<8x128xf32, #tpu.memory_space<vmem>>, vector<8x128xf32>
    %25 = vector.shape_cast %22 : vector<16x1xf32> to vector<1x16x1xf32>
    %cst_14 = arith.constant dense<0.000000e+00> : vector<1xf32>
    %26 = vector.multi_reduction <add>, %25, %cst_14 [1, 2] : vector<1x16x1xf32> to vector<1xf32>
    %27 = vector.shape_cast %26 : vector<1xf32> to vector<1x1x1xf32>
    %28 = vector.extract %27[0, 0, 0] : f32 from vector<1x1x1xf32>
    %29 = vector.broadcast %28 : f32 to vector<8x128xf32>
    %30 = arith.addf %24, %29 : vector<8x128xf32>
    %c0_15 = arith.constant 0 : index
    %c0_16 = arith.constant 0 : index
    %31 = vector.load %arg6[%c0_15, %c0_16] : memref<8x128xf32, #tpu.memory_space<vmem>>, vector<8x128xf32>
    tpu.vector_store %arg6[%c0_15, %c0_16], %30 {strides = array<i32>} : memref<8x128xf32, #tpu.memory_space<vmem>>, vector<8x128xf32>,
    %c0_17 = arith.constant 0 : index
    %c0_18 = arith.constant 0 : index
    %32 = vector.load %arg7[%c0_17, %c0_18] : memref<8x128xf32, #tpu.memory_space<vmem>>, vector<8x128xf32>
    %33 = arith.mulf %23, %23 : vector<16x16xf32>
    %34 = vector.shape_cast %33 : vector<16x16xf32> to vector<1x16x16xf32>
    %cst_19 = arith.constant dense<0.000000e+00> : vector<1xf32>
    %35 = vector.multi_reduction <add>, %34, %cst_19 [1, 2] : vector<1x16x16xf32> to vector<1xf32>
    %36 = vector.shape_cast %35 : vector<1xf32> to vector<1x1x1xf32>
    %37 = vector.extract %36[0, 0, 0] : f32 from vector<1x1x1xf32>
    %38 = vector.broadcast %37 : f32 to vector<8x128xf32>
    %39 = arith.addf %32, %38 : vector<8x128xf32>
    %c0_20 = arith.constant 0 : index
    %c0_21 = arith.constant 0 : index
    %40 = vector.load %arg7[%c0_20, %c0_21] : memref<8x128xf32, #tpu.memory_space<vmem>>, vector<8x128xf32>
    tpu.vector_store %arg7[%c0_20, %c0_21], %39 {strides = array<i32>} : memref<8x128xf32, #tpu.memory_space<vmem>>, vector<8x128xf32>,
    return
  }
  func.func @transform_0(%arg0: i32, %arg1: i32) -> (i32, i32) {
    %c1_i32 = arith.constant 1 : i32
    %0 = arith.muli %arg0, %c1_i32 : i32
    %1 = arith.addi %0, %arg1 : i32
    %c0_i32 = arith.constant 0 : i32
    %c0_i32_0 = arith.constant 0 : i32
    return %1, %c0_i32 : i32, i32
  }
  func.func @transform_1(%arg0: i32, %arg1: i32) -> (i32, i32) {
    %c1_i32 = arith.constant 1 : i32
    %0 = arith.muli %arg0, %c1_i32 : i32
    %1 = arith.addi %0, %arg1 : i32
    %c0_i32 = arith.constant 0 : i32
    %c0_i32_0 = arith.constant 0 : i32
    return %1, %c0_i32 : i32, i32
  }
  func.func @transform_2(%arg0: i32, %arg1: i32) -> (i32, i32) {
    %c1_i32 = arith.constant 1 : i32
    %0 = arith.muli %arg0, %c1_i32 : i32
    %1 = arith.addi %0, %arg1 : i32
    %c0_i32 = arith.constant 0 : i32
    %c0_i32_0 = arith.constant 0 : i32
    return %1, %c0_i32 : i32, i32
  }
  func.func @transform_3(%arg0: i32, %arg1: i32) -> (i32, i32) {
    %c1_i32 = arith.constant 1 : i32
    %0 = arith.muli %arg0, %c1_i32 : i32
    %1 = arith.addi %0, %arg1 : i32
    %c0_i32 = arith.constant 0 : i32
    %c0_i32_0 = arith.constant 0 : i32
    return %1, %c0_i32 : i32, i32
  }
  func.func @transform_4(%arg0: i32, %arg1: i32) -> (i32, i32) {
    %c0_i32 = arith.constant 0 : i32
    %c0_i32_0 = arith.constant 0 : i32
    return %arg0, %c0_i32 : i32, i32
  }
  func.func @transform_5(%arg0: i32, %arg1: i32) -> (i32, i32) {
    %c0_i32 = arith.constant 0 : i32
    %c0_i32_0 = arith.constant 0 : i32
    return %arg0, %c0_i32 : i32, i32
  }
}

</mosaic_0001>

<llo_original>
// kernel: tpu_custom_call.1
$region0: #{tpu_custom_call.1}
  #allocation0 [shape = 'u32[]', space=smem, size = 0x4, offset = 0x4, fixed_abs, tag = 'smem constant byte address 0x4 - core index']
  #allocation1 [shape = 'u32[144,128]{1,0:T(1,128)}', space=vmem, size = 0x12000, scoped, tag = 'internal scratch']
  %s0 = inlined_call_operand.vmem [shape: f32[32,32], index: 0, kind: input, shape index: {}]
  %s1 = inlined_call_operand.vmem [shape: f32[32,32], index: 1, kind: input, shape index: {}]
  %s2 = inlined_call_operand.vmem [shape: f32[32,16], index: 2, kind: input, shape index: {}]
  %s3 = inlined_call_operand.vmem [shape: f32[32,16], index: 3, kind: input, shape index: {}]
  %s4 = inlined_call_operand.hbm [shape: f32[16,128], index: 4, kind: output, shape index: {0}]
  %s5 = inlined_call_operand.hbm [shape: f32[16,128], index: 5, kind: output, shape index: {1}]
  %6 = xla_tuple %s4, %s5
  %s7 = sld [smem:[#allocation0]]
  $region61: #{tpu_custom_call.1} parent=0
    _
  %s9 = ssub.s32 1, %s7
  %s10 = scalar_select 0, %s9, %s7
  $region1: #{tpu_custom_call.1} parent=0
    #allocation2 [shape = 'u8[8192]{0}', space=vmem, size = 0x2000, scoped, tag = 'output window, operand 0']
    #allocation3 [shape = 's32[2]{0}', space=sflag, size = 0x8, scoped, tag = 'scoped memory for tpu_custom_call.1']
    #allocation4 [shape = 'u8[8192]{0}', space=vmem, size = 0x2000, scoped, tag = 'output window, operand 1']
    #allocation5 [shape = 's32[2]{0}', space=sflag, size = 0x8, scoped, tag = 'scoped memory for tpu_custom_call.1']
    %11 = vsyncpa [#allocation3], 0
    %s12 = scalar_lea.sflag [#allocation3], 1
    %13 = vsyncpa %s12, 0
    %14 = vsyncpa [#allocation5], 0
    %s15 = scalar_lea.sflag [#allocation5], 1
    %16 = vsyncpa %s15, 0
    loop: start=0, step=1, limit=4
    $region2: #{tpu_custom_call.1} parent=1 // loop_pre_header
      _
    $region3: #{tpu_custom_call.1} parent=1 // loop_header
      %s18 = sphi 0, %s22
      %p19 = scmp.ge.s32.totalorder %s18, 4
      %s25 = sphi 0, %s37
      %s26 = sphi 0, %s33
      %s27 = sphi 0, %s25
      %s28 = sphi 0, %s26
      %s29 = sphi 0, %s27
      %s30 = sphi 0, %s28
      %s42 = sphi 0, %s44
      %s45 = sphi 0, %s42
      %s46 = sphi 0, %s45
      %s62 = sphi 0, %s46
      %s70 = sphi 0, %s72
      %s73 = sphi 0, %s70
      %s74 = sphi 0, %s73
      %s90 = sphi 0, %s74
      %s98 = sphi 0, %s100
      %s101 = sphi 0, %s98
      %s102 = sphi 0, %s101
      %s118 = sphi 0, %s102
      %s126 = sphi 0, %s128
      %s129 = sphi 0, %s126
      %s130 = sphi 0, %s129
      %s146 = sphi 0, %s130
      %s152 = sphi 0, %s154
      %s155 = sphi 0, %s152
      %s156 = sphi 0, %s155
      %s172 = sphi 0, %s156
      %s178 = sphi 0, %s180
      %s181 = sphi 0, %s178
      %s182 = sphi 0, %s181
      %s198 = sphi 0, %s182
    $region4: #{tpu_custom_call.1} parent=1 // loop_header_branch
      %21 = sbr.rel (%p19) target = $region8
    $region5: #{tpu_custom_call.1} parent=1 // loop_body
      %s23 = ssub.s32 %s18, 1
      %s24 = ssub.s32 %s18, 2
      %s31 = sadd.s32 1, %s26
      %p32 = scmp.ge.s32.totalorder %s31, 1
      %s33 = scalar_select %p32, 0, %s31
      %s34 = sadd.s32 1, %s25
      %s35 = scalar_select %p32, %s34, %s25
      %p36 = scmp.ge.s32.totalorder %s35, 2
      %s37 = scalar_select %p36, 0, %s35
      %s38 = sadd.s32 %s25, %s26
      %s39 = sadd.s32 %s37, %s33
      %s40 = ssub.s32 %s38, %s39
      %p41 = scmp.eq.s32.totalorder %s40, 0
      %s43 = sadd.s32 %s42, 1
      %s44 = scalar_select %p41, %s42, %s43
      %p47 = pneg %p41
      %p48 = scmp.eq.s32.totalorder %s18, 1
      %p49 = por %p47, %p48
      %p50 = scmp.ne.s32.totalorder %s42, %s45
      %p51 = scmp.eq.s32.totalorder %s18, 0
      %p52 = por %p50, %p51
      %p53 = scmp.ne.s32.totalorder %s42, %s45
      %p54 = scmp.eq.s32.totalorder %s23, 1
      %p55 = por %p53, %p54
      %p56 = scmp.ne.s32.totalorder %s45, %s46
      %p57 = scmp.eq.s32.totalorder %s23, 0
      %p58 = por %p56, %p57
      %p59 = scmp.ne.s32.totalorder %s45, %s46
      %p60 = scmp.eq.s32.totalorder %s24, 1
      %p61 = por %p59, %p60
      %p63 = scmp.ne.s32.totalorder %s46, %s62
      %p64 = scmp.eq.s32.totalorder %s24, 0
      %p65 = por %p63, %p64
      %s66 = sadd.s32 %s25, %s26
      %s67 = sadd.s32 %s37, %s33
      %s68 = ssub.s32 %s66, %s67
      %p69 = scmp.eq.s32.totalorder %s68, 0
      %s71 = sadd.s32 %s70, 1
      %s72 = scalar_select %p69, %s70, %s71
      %p75 = pneg %p69
      %p76 = scmp.eq.s32.totalorder %s18, 1
      %p77 = por %p75, %p76
      %p78 = scmp.ne.s32.totalorder %s70, %s73
      %p79 = scmp.eq.s32.totalorder %s18, 0
      %p80 = por %p78, %p79
      %p81 = scmp.ne.s32.totalorder %s70, %s73
      %p82 = scmp.eq.s32.totalorder %s23, 1
      %p83 = por %p81, %p82
      %p84 = scmp.ne.s32.totalorder %s73, %s74
      %p85 = scmp.eq.s32.totalorder %s23, 0
      %p86 = por %p84, %p85
      %p87 = scmp.ne.s32.totalorder %s73, %s74
      %p88 = scmp.eq.s32.totalorder %s24, 1
      %p89 = por %p87, %p88
      %p91 = scmp.ne.s32.totalorder %s74, %s90
      %p92 = scmp.eq.s32.totalorder %s24, 0
      %p93 = por %p91, %p92
      %s94 = sadd.s32 %s25, %s26
      %s95 = sadd.s32 %s37, %s33
      %s96 = ssub.s32 %s94, %s95
      %p97 = scmp.eq.s32.totalorder %s96, 0
      %s99 = sadd.s32 %s98, 1
      %s100 = scalar_select %p97, %s98, %s99
      %p103 = pneg %p97
      %p104 = scmp.eq.s32.totalorder %s18, 1
      %p105 = por %p103, %p104
      %p106 = scmp.ne.s32.totalorder %s98, %s101
      %p107 = scmp.eq.s32.totalorder %s18, 0
      %p108 = por %p106, %p107
      %p109 = scmp.ne.s32.totalorder %s98, %s101
      %p110 = scmp.eq.s32.totalorder %s23, 1
      %p111 = por %p109, %p110
      %p112 = scmp.ne.s32.totalorder %s101, %s102
      %p113 = scmp.eq.s32.totalorder %s23, 0
      %p114 = por %p112, %p113
      %p115 = scmp.ne.s32.totalorder %s101, %s102
      %p116 = scmp.eq.s32.totalorder %s24, 1
      %p117 = por %p115, %p116
      %p119 = scmp.ne.s32.totalorder %s102, %s118
      %p120 = scmp.eq.s32.totalorder %s24, 0
      %p121 = por %p119, %p120
      %s122 = sadd.s32 %s25, %s26
      %s123 = sadd.s32 %s37, %s33
      %s124 = ssub.s32 %s122, %s123
      %p125 = scmp.eq.s32.totalorder %s124, 0
      %s127 = sadd.s32 %s126, 1
      %s128 = scalar_select %p125, %s126, %s127
      %p131 = pneg %p125
      %p132 = scmp.eq.s32.totalorder %s18, 1
      %p133 = por %p131, %p132
      %p134 = scmp.ne.s32.totalorder %s126, %s129
      %p135 = scmp.eq.s32.totalorder %s18, 0
      %p136 = por %p134, %p135
      %p137 = scmp.ne.s32.totalorder %s126, %s129
      %p138 = scmp.eq.s32.totalorder %s23, 1
      %p139 = por %p137, %p138
      %p140 = scmp.ne.s32.totalorder %s129, %s130
      %p141 = scmp.eq.s32.totalorder %s23, 0
      %p142 = por %p140, %p141
      %p143 = scmp.ne.s32.totalorder %s129, %s130
      %p144 = scmp.eq.s32.totalorder %s24, 1
      %p145 = por %p143, %p144
      %p147 = scmp.ne.s32.totalorder %s130, %s146
      %p148 = scmp.eq.s32.totalorder %s24, 0
      %p149 = por %p147, %p148
      %s150 = ssub.s32 %s25, %s37
      %p151 = scmp.eq.s32.totalorder %s150, 0
      %s153 = sadd.s32 %s152, 1
      %s154 = scalar_select %p151, %s152, %s153
      %p157 = pneg %p151
      %p158 = scmp.eq.s32.totalorder %s18, 1
      %p159 = por %p157, %p158
      %p160 = scmp.ne.s32.totalorder %s152, %s155
      %p161 = scmp.eq.s32.totalorder %s18, 0
      %p162 = por %p160, %p161
      %p163 = scmp.ne.s32.totalorder %s152, %s155
      %p164 = scmp.eq.s32.totalorder %s23, 1
      %p165 = por %p163, %p164
      %p166 = scmp.ne.s32.totalorder %s155, %s156
      %p167 = scmp.eq.s32.totalorder %s23, 0
      %p168 = por %p166, %p167
      %p169 = scmp.ne.s32.totalorder %s155, %s156
      %p170 = scmp.eq.s32.totalorder %s24, 1
      %p171 = por %p169, %p170
      %p173 = scmp.ne.s32.totalorder %s156, %s172
      %p174 = scmp.eq.s32.totalorder %s24, 0
      %p175 = por %p173, %p174
      %s176 = ssub.s32 %s25, %s37
      %p177 = scmp.eq.s32.totalorder %s176, 0
      %s179 = sadd.s32 %s178, 1
      %s180 = scalar_select %p177, %s178, %s179
      %p183 = pneg %p177
      %p184 = scmp.eq.s32.totalorder %s18, 1
      %p185 = por %p183, %p184
      %p186 = scmp.ne.s32.totalorder %s178, %s181
      %p187 = scmp.eq.s32.totalorder %s18, 0
      %p188 = por %p186, %p187
      %p189 = scmp.ne.s32.totalorder %s178, %s181
      %p190 = scmp.eq.s32.totalorder %s23, 1
      %p191 = por %p189, %p190
      %p192 = scmp.ne.s32.totalorder %s181, %s182
      %p193 = scmp.eq.s32.totalorder %s23, 0
      %p194 = por %p192, %p193
      %p195 = scmp.ne.s32.totalorder %s181, %s182
      %p196 = scmp.eq.s32.totalorder %s24, 1
      %p197 = por %p195, %p196
      %p199 = scmp.ne.s32.totalorder %s182, %s198
      %p200 = scmp.eq.s32.totalorder %s24, 0
      %p201 = por %p199, %p200
      %p202 = scmp.le.s32.totalorder 1, %s18
      %p203 = scmp.lt.s32.totalorder %s18, 3
      %p204 = pnand %p202, %p203
      %p205 = pneg %p204
      // Predicated region
      $region9: #{tpu_custom_call.1} parent=5 // pred_check
        _
      $region10: #{tpu_custom_call.1} parent=5 // pred_check_branch
        %207 = sbr.rel (%p204) target = $region12
      $region11: #{tpu_custom_call.1} parent=5 // pred_region
        %s208 = ssub.s32 %s18, 1
      $region12: #{tpu_custom_call.1} parent=5 // pred_fallthru
        _
      %p209 = scmp.lt.s32.totalorder %s18, 2
      // Predicated region
      $region13: #{tpu_custom_call.1} parent=5 // pred_check
        %p210 = pneg %p209
      $region14: #{tpu_custom_call.1} parent=5 // pred_check_branch
        %212 = sbr.rel (%p210) target = $region16
      $region15: #{tpu_custom_call.1} parent=5 // pred_region
        // Predicated region
        $region17: #{tpu_custom_call.1} parent=15 // pred_check
          %p213 = pneg %p52
        $region18: #{tpu_custom_call.1} parent=15 // pred_check_branch
          %215 = sbr.rel (%p213) target = $region20
        $region19: #{tpu_custom_call.1} parent=15 // pred_region
          %s216 = sadd.s32 %s25, %s26
          %s217 = smul.u32 2, %s216
          %p218 = scmp.lt.s32.totalorder %s217, 3
          %s219 = scalar_select %p218, %s217, 3
          %s220 = smul.addr %s219, 8
          %s221 = scalar_lea.vmem %s0, %s220
          %s222 = sadd.s32 %s25, %s26
          %s223 = smul.u32 2, %s222
        $region20: #{tpu_custom_call.1} parent=15 // pred_fallthru
          _
        // Predicated region
        $region21: #{tpu_custom_call.1} parent=15 // pred_check
          %p224 = pneg %p80
        $region22: #{tpu_custom_call.1} parent=15 // pred_check_branch
          %226 = sbr.rel (%p224) target = $region24
        $region23: #{tpu_custom_call.1} parent=15 // pred_region
          %s227 = sadd.s32 %s25, %s26
          %s228 = smul.u32 2, %s227
          %p229 = scmp.lt.s32.totalorder %s228, 3
          %s230 = scalar_select %p229, %s228, 3
          %s231 = smul.addr %s230, 8
          %s232 = scalar_lea.vmem %s1, %s231
          %s233 = sadd.s32 %s25, %s26
          %s234 = smul.u32 2, %s233
        $region24: #{tpu_custom_call.1} parent=15 // pred_fallthru
          _
        // Predicated region
        $region25: #{tpu_custom_call.1} parent=15 // pred_check
          %p235 = pneg %p108
        $region26: #{tpu_custom_call.1} parent=15 // pred_check_branch
          %237 = sbr.rel (%p235) target = $region28
        $region27: #{tpu_custom_call.1} parent=15 // pred_region
          %s238 = sadd.s32 %s25, %s26
          %s239 = smul.u32 2, %s238
          %p240 = scmp.lt.s32.totalorder %s239, 3
          %s241 = scalar_select %p240, %s239, 3
          %s242 = smul.addr %s241, 8
          %s243 = scalar_lea.vmem %s2, %s242
          %s244 = sadd.s32 %s25, %s26
          %s245 = smul.u32 2, %s244
        $region28: #{tpu_custom_call.1} parent=15 // pred_fallthru
          _
        // Predicated region
        $region29: #{tpu_custom_call.1} parent=15 // pred_check
          %p246 = pneg %p136
        $region30: #{tpu_custom_call.1} parent=15 // pred_check_branch
          %248 = sbr.rel (%p246) target = $region32
        $region31: #{tpu_custom_call.1} parent=15 // pred_region
          %s249 = sadd.s32 %s25, %s26
          %s250 = smul.u32 2, %s249
          %p251 = scmp.lt.s32.totalorder %s250, 3
          %s252 = scalar_select %p251, %s250, 3
          %s253 = smul.addr %s252, 8
          %s254 = scalar_lea.vmem %s3, %s253
          %s255 = sadd.s32 %s25, %s26
          %s256 = smul.u32 2, %s255
        $region32: #{tpu_custom_call.1} parent=15 // pred_fallthru
          _
      $region16: #{tpu_custom_call.1} parent=5 // pred_fallthru
        _
      %p257 = scmp.le.s32.totalorder 1, %s18
      %p258 = scmp.lt.s32.totalorder %s18, 3
      %p259 = pnand %p257, %p258
      %p260 = pneg %p259
      // Predicated region
      $region33: #{tpu_custom_call.1} parent=5 // pred_check
        _
      $region34: #{tpu_custom_call.1} parent=5 // pred_check_branch
        %262 = sbr.rel (%p259) target = $region36
      $region35: #{tpu_custom_call.1} parent=5 // pred_region
        %s263 = ssub.s32 %s18, 1
        %s264 = sadd.s32 %s27, %s28
        %s265 = smul.u32 2, %s264
        %p266 = scmp.lt.s32.totalorder %s265, 3
        %s267 = scalar_select %p266, %s265, 3
        %s268 = smul.addr %s267, 8
        %s269 = scalar_lea.vmem %s0, %s268
        %p270 = pneg %p58
        %p271 = pneg %p55
        %s272 = sadd.s32 %s27, %s28
        %s273 = smul.u32 2, %s272
        %p274 = scmp.lt.s32.totalorder %s273, 3
        %s275 = scalar_select %p274, %s273, 3
        %s276 = smul.addr %s275, 8
        %s277 = scalar_lea.vmem %s1, %s276
        %p278 = pneg %p86
        %p279 = pneg %p83
        %s280 = sadd.s32 %s27, %s28
        %s281 = smul.u32 2, %s280
        %p282 = scmp.lt.s32.totalorder %s281, 3
        %s283 = scalar_select %p282, %s281, 3
        %s284 = smul.addr %s283, 8
        %s285 = scalar_lea.vmem %s2, %s284
        %p286 = pneg %p114
        %p287 = pneg %p111
        %s288 = sadd.s32 %s27, %s28
        %s289 = smul.u32 2, %s288
        %p290 = scmp.lt.s32.totalorder %s289, 3
        %s291 = scalar_select %p290, %s289, 3
        %s292 = smul.addr %s291, 8
        %s293 = scalar_lea.vmem %s3, %s292
        %p294 = pneg %p142
        %p295 = pneg %p139
        %p296 = pneg %p168
        %p297 = pneg %p165
        %s298 = sand.u32 %s155, 1
        %s299 = scalar_lea.sflag [#allocation3], %s298
        %s300 = sand.u32 %s155, 1
        %s301 = smul.addr %s300, 8
        %s302 = scalar_lea.vmem [#allocation2], %s301
        %p303 = pneg %p194
        %p304 = pneg %p191
        %s305 = sand.u32 %s181, 1
        %s306 = scalar_lea.sflag [#allocation5], %s305
        %s307 = sand.u32 %s181, 1
        %s308 = smul.addr %s307, 8
        %s309 = scalar_lea.vmem [#allocation4], %s308
        %s310 = sadd.s32 %s27, %s28
        %s311 = smul.u32 2, %s310
        %p312 = scmp.lt.s32.totalorder %s311, 3
        %s313 = scalar_select %p312, %s311, 3
        %s314 = smul.addr %s313, 8
        %s315 = scalar_lea.vmem %s0, %s314
        %s316 = sadd.s32 %s27, %s28
        %s317 = smul.u32 2, %s316
        %s318 = sadd.s32 %s27, %s28
        %s319 = smul.u32 2, %s318
        %p320 = scmp.lt.s32.totalorder %s319, 3
        %s321 = scalar_select %p320, %s319, 3
        %s322 = smul.addr %s321, 8
        %s323 = scalar_lea.vmem %s1, %s322
        %s324 = sadd.s32 %s27, %s28
        %s325 = smul.u32 2, %s324
        %s326 = sadd.s32 %s27, %s28
        %s327 = smul.u32 2, %s326
        %p328 = scmp.lt.s32.totalorder %s327, 3
        %s329 = scalar_select %p328, %s327, 3
        %s330 = smul.addr %s329, 8
        %s331 = scalar_lea.vmem %s2, %s330
        %s332 = sadd.s32 %s27, %s28
        %s333 = smul.u32 2, %s332
        %s334 = sadd.s32 %s27, %s28
        %s335 = smul.u32 2, %s334
        %p336 = scmp.lt.s32.totalorder %s335, 3
        %s337 = scalar_select %p336, %s335, 3
        %s338 = smul.addr %s337, 8
        %s339 = scalar_lea.vmem %s3, %s338
        %s340 = sadd.s32 %s27, %s28
        %s341 = smul.u32 2, %s340
        %p342 = scmp.eq.s32.totalorder %s28, 0
        // Predicated region
        $region37: #{tpu_custom_call.1} parent=35 // pred_check
          %p343 = pneg %p342
        $region38: #{tpu_custom_call.1} parent=35 // pred_check_branch
          %345 = sbr.rel (%p343) target = $region40
        $region39: #{tpu_custom_call.1} parent=35 // pred_region
          %346 = vst [vmem:[%s302] sm:$0xff] 0.0
          %347 = vst [vmem:[%s309] sm:$0xff] 0.0
        $region40: #{tpu_custom_call.1} parent=35 // pred_fallthru
          _
        %v348 = vld [vmem:[%s315] sm:$0xff]
        %v349 = vld [vmem:[%s315 + $0x8] sm:$0xff]
        %v350 = vld [vmem:[%s323] sm:$0xff]
        %v351 = vld [vmem:[%s323 + $0x8] sm:$0xff]
        %v352 = vld [vmem:[%s331] sm:$0xff]
        %v353 = vld [vmem:[%s331 + $0x8] sm:$0xff]
        %v354 = vld [vmem:[%s339] sm:$0xff]
        %v355 = vld [vmem:[%s339 + $0x8] sm:$0xff]
        %v356 = vmul.f32 %v348, %v350
        %v357 = vmul.f32 %v349, %v351
        %vm358 = vcmask 261120
        %v359 = vsel %vm358, %v356, 0.0
        %360 = vadd.xlane.f32.xlu0 %v359
        %v361 = vpop.xlane.xlu0 %360
        %v362 = vsel %vm358, %v357, 0.0
        %363 = vadd.xlane.f32.xlu0 %v362
        %v364 = vpop.xlane.xlu0 %363
        %v365 = vmul.f32 %v348, %v348
        %v366 = vmul.f32 %v349, %v349
        %v367 = vsel %vm358, %v365, 0.0
        %368 = vadd.xlane.f32.xlu0 %v367
        %v369 = vpop.xlane.xlu0 %368
        %v370 = vsel %vm358, %v366, 0.0
        %371 = vadd.xlane.f32.xlu0 %v370
        %v372 = vpop.xlane.xlu0 %371
        %v373 = vmul.f32 %v350, %v350
        %v374 = vmul.f32 %v351, %v351
        %v375 = vsel %vm358, %v373, 0.0
        %376 = vadd.xlane.f32.xlu0 %v375
        %v377 = vpop.xlane.xlu0 %376
        %v378 = vsel %vm358, %v374, 0.0
        %379 = vadd.xlane.f32.xlu0 %v378
        %v380 = vpop.xlane.xlu0 %379
        %v381 = vmax.f32 %v369, 1e-16
        %v382 = vmax.f32 %v372, 1e-16
        %v383 = vmax.f32 %v377, 1e-16
        %v384 = vmax.f32 %v380, 1e-16
        %v385 = vmul.f32 %v381, %v383
        %v386 = vmul.f32 %v382, %v384
        %v387 = vrsqrt.pop %v385
        %v388 = vrsqrt.pop %v386
        %v389 = vmul.f32 %v361, %v387
        %v390 = vmul.f32 %v364, %v388
        %v391 = vsub.f32 %v352, %v354
        %v392 = vsub.f32 %v353, %v355
        %v393 = vld [vmem:[%s302] sm:$0xff]
        %vm394 = vcmask 7168
        %v395 = vsel %vm394, %v389, 0.0
        %v396 = vsel %vm394, %v390, 0.0
        %v397 = vadd.f32 %v395, %v396
        %398 = vadd.xlane.f32.xlu0 %v397
        %v399 = vpop.xlane.xlu0 %398
        %v400 = vrot.slane %v399, 4
        %v401 = vadd.f32 %v399, %v400
        %v402 = vrot.slane %v401, 2
        %v403 = vadd.f32 %v401, %v402
        %v404 = vrot.slane %v403, 1
        %v405 = vadd.f32 %v403, %v404
        %s406 = vtos %v405
        %v407 = vstv %s406
        %v408 = vadd.f32 %v393, %v407
        %409 = vst [vmem:[%s302] sm:$0xff] %v408
        %v410 = vld [vmem:[%s309] sm:$0xff]
        %v411 = vmul.f32 %v391, %v391
        %v412 = vmul.f32 %v392, %v392
        %vm413 = vcmask 130048
        %v414 = vsel %vm413, %v411, 0.0
        %v415 = vsel %vm413, %v412, 0.0
        %v416 = vadd.f32 %v414, %v415
        %417 = vadd.xlane.f32.xlu0 %v416
        %v418 = vpop.xlane.xlu0 %417
        %v419 = vrot.slane %v418, 4
        %v420 = vadd.f32 %v418, %v419
        %v421 = vrot.slane %v420, 2
        %v422 = vadd.f32 %v420, %v421
        %v423 = vrot.slane %v422, 1
        %v424 = vadd.f32 %v422, %v423
        %s425 = vtos %v424
        %v426 = vstv %s425
        %v427 = vadd.f32 %v410, %v426
        %428 = vst [vmem:[%s309] sm:$0xff] %v427
        %s429 = sand.u32 %s155, 1
        %s430 = scalar_lea.sflag [#allocation3], %s429
        %s431 = sand.u32 %s155, 1
        %s432 = smul.addr %s431, 8
        %s433 = scalar_lea.vmem [#allocation2], %s432
        %s434 = sand.u32 %s181, 1
        %s435 = scalar_lea.sflag [#allocation5], %s434
        %s436 = sand.u32 %s181, 1
        %s437 = smul.addr %s436, 8
        %s438 = scalar_lea.vmem [#allocation4], %s437
        // Predicated region
        $region41: #{tpu_custom_call.1} parent=35 // pred_check
          %p439 = pneg %p165
        $region42: #{tpu_custom_call.1} parent=35 // pred_check_branch
          %441 = sbr.rel (%p439) target = $region44
        $region43: #{tpu_custom_call.1} parent=35 // pred_region
          %s443 = ssub.s32 128, 128
          %444 = vsyncadd %s430, %s443
          %s445 = smul.addr %s27, 128
          %s446 = scalar_lea.hbm %s4, %s445
          %s448 = sshll.u32 %s433, 4
          %s449 = int_to_ptr.vmem [resolvable:$true] %s448
          %451 = dma.vmem_to_hbm [thread:$0]  %s449, 128, %s446, %s430
        $region44: #{tpu_custom_call.1} parent=35 // pred_fallthru
          _
        // Predicated region
        $region45: #{tpu_custom_call.1} parent=35 // pred_check
          %p452 = pneg %p191
        $region46: #{tpu_custom_call.1} parent=35 // pred_check_branch
          %454 = sbr.rel (%p452) target = $region48
        $region47: #{tpu_custom_call.1} parent=35 // pred_region
          %s456 = ssub.s32 128, 128
          %457 = vsyncadd %s435, %s456
          %s458 = smul.addr %s27, 128
          %s459 = scalar_lea.hbm %s5, %s458
          %s461 = sshll.u32 %s438, 4
          %s462 = int_to_ptr.vmem [resolvable:$true] %s461
          %464 = dma.vmem_to_hbm [thread:$0]  %s462, 128, %s459, %s435
        $region48: #{tpu_custom_call.1} parent=35 // pred_fallthru
          _
      $region36: #{tpu_custom_call.1} parent=5 // pred_fallthru
        _
      %p465 = scmp.le.s32.totalorder 2, %s18
      // Predicated region
      $region49: #{tpu_custom_call.1} parent=5 // pred_check
        %p466 = pneg %p465
      $region50: #{tpu_custom_call.1} parent=5 // pred_check_branch
        %468 = sbr.rel (%p466) target = $region52
      $region51: #{tpu_custom_call.1} parent=5 // pred_region
        %s469 = ssub.s32 %s18, 2
        // Predicated region
        $region53: #{tpu_custom_call.1} parent=51 // pred_check
          %p470 = pneg %p171
        $region54: #{tpu_custom_call.1} parent=51 // pred_check_branch
          %472 = sbr.rel (%p470) target = $region56
        $region55: #{tpu_custom_call.1} parent=51 // pred_region
          %s473 = sand.u32 %s156, 1
          %s474 = scalar_lea.sflag [#allocation3], %s473
          %s475 = sand.u32 %s156, 1
          %s476 = smul.addr %s475, 8
          %s477 = scalar_lea.vmem [#allocation2], %s476
          %478 = dma.done %s474, 128
        $region56: #{tpu_custom_call.1} parent=51 // pred_fallthru
          _
        // Predicated region
        $region57: #{tpu_custom_call.1} parent=51 // pred_check
          %p479 = pneg %p197
        $region58: #{tpu_custom_call.1} parent=51 // pred_check_branch
          %481 = sbr.rel (%p479) target = $region60
        $region59: #{tpu_custom_call.1} parent=51 // pred_region
          %s482 = sand.u32 %s182, 1
          %s483 = scalar_lea.sflag [#allocation5], %s482
          %s484 = sand.u32 %s182, 1
          %s485 = smul.addr %s484, 8
          %s486 = scalar_lea.vmem [#allocation4], %s485
          %487 = dma.done %s483, 128
        $region60: #{tpu_custom_call.1} parent=51 // pred_fallthru
          _
      $region52: #{tpu_custom_call.1} parent=5 // pred_fallthru
        _
    $region6: #{tpu_custom_call.1} parent=1 // loop_footer
      %s22 = sadd.s32 1, %s18
    $region7: #{tpu_custom_call.1} parent=1 // loop_footer_branch
      %17 = sbr.rel target = $region3
    $region8: #{tpu_custom_call.1} parent=1 // loop_exit
      _
    %488 = vsyncpa [#allocation3], 1
    %s489 = scalar_lea.sflag [#allocation3], 1
    %490 = vsyncpa %s489, 1
    %491 = vsyncpa [#allocation5], 1
    %s492 = scalar_lea.sflag [#allocation5], 1
    %493 = vsyncpa %s492, 1

</llo_original>
